<compile_context>
chip_gen: v5e
topology: v5e:2x2
jax: 0.10.0
libtpu: 0.0.40
codegen_flags: <defaults>
</compile_context>

<pallas_src>
import numpy as np

import jax
import jax.numpy as jnp
from jax.experimental import pallas as pl
from jax.experimental.pallas import tpu as pltpu


def _round_up(a: int, b: int) -> int:
    return (a + b - 1) // b * b


def _wl_hist_kernel(adj_ref, x_ref, sig_ref):
    """One (tm, tn) output tile of sig = adj @ x_onehot, K-tiled.

    The output BlockSpec index (i, j) is constant across the trailing
    (reduction) grid axis k, so the output tile stays VMEM-resident across it
    and doubles as the accumulator: no scratch buffer, no finalize copy.
    """
    k = pl.program_id(2)

    @pl.when(k == 0)
    def _():
        sig_ref[...] = jnp.zeros_like(sig_ref)

    sig_ref[...] += jnp.dot(
        adj_ref[...], x_ref[...], preferred_element_type=sig_ref.dtype
    )


def _pick_tiles(n_nodes: int, n_colors: int, itemsize: int):
    """Tile sizes adapted to problem size / input dtype (VMEM budget < ~24 MiB)."""
    n = max(n_nodes, 1)
    # Row-block (sublane dim): multiple of 32 (covers int8 sublane packing).
    # Aim for >= 2 row blocks on medium graphs so both v7x TensorCores get work.
    tm = min(256, max(32, _round_up(n // 2 if n >= 64 else n, 32)))
    # Contraction dim (lane dim of adj, sublane dim of x): multiple of 128.
    cap = 1024 if itemsize >= 4 else 2048
    tk = min(cap, _round_up(n, 128))
    # Color dim: collapse to as few lane-dense blocks as VMEM allows, so the
    # N^2 adjacency stream is read (close to) exactly once.
    tn = min(cap, _round_up(max(n_colors, 1), 128))
    return tm, tk, tn


def wl_signature(adj, x_onehot, *, out_dtype, tm, tk, tn):
    """Neighbor-color histogram sig = adj @ x_onehot as a tiled Pallas matmul.

    adj:      (m_pad, k_pad) target-major adjacency counts, pre-padded,
              already in the compute dtype (int8 / bf16 / f32)
    x_onehot: (k_pad, c_pad) one-hot node colors, same dtype
    returns:  (m_pad, c_pad) histograms in `out_dtype` (int32 or f32)
    """
    M, K = adj.shape
    Kx, C = x_onehot.shape
    assert K == Kx and M % tm == 0 and K % tk == 0 and C % tn == 0

    grid = (M // tm, C // tn, K // tk)  # reduction axis last

    return pl.pallas_call(
        _wl_hist_kernel,
        out_shape=jax.ShapeDtypeStruct((M, C), out_dtype),
        grid=grid,
        in_specs=[
            pl.BlockSpec((tm, tk), lambda i, j, k: (i, k)),  # adjacency tile
            pl.BlockSpec((tk, tn), lambda i, j, k: (k, j)),  # one-hot colors
        ],
        out_specs=pl.BlockSpec((tm, tn), lambda i, j, k: (i, j)),
        compiler_params=pltpu.CompilerParams(
            dimension_semantics=("parallel", "parallel", "arbitrary"),
            vmem_limit_bytes=32 * 1024 * 1024,
        ),
    )(adj, x_onehot)


def _mxu_has_int8() -> bool:
    """v5e / v6e have a native s8 x s8 -> s32 MXU path; v7x does not (fp8 only)."""
    try:
        kind = jax.devices()[0].device_kind.lower()
    except Exception:
        return False
    return any(t in kind for t in ("v5e", "v5 lite", "v5litepod", "v6e", "v6 lite"))


class WLConv:
    """JAX/Pallas port of torch_geometric.nn.conv.WLConv (forward only)."""

    def __init__(self):
        self.hashmap = {}

    def reset_parameters(self):
        self.hashmap = {}

    def __call__(self, x, edge_index, *, validate=False):
        # ---- host-side preprocessing (all O(N) / O(E), no N^2 passes) ----
        x_np = np.asarray(jax.device_get(x))
        if x_np.ndim > 1:
            if validate:  # optional: mirrors the PyTorch one-hot assert
                assert np.all(x_np.sum(-1) == 1)
            num_colors = int(x_np.shape[-1])
            colors_np = x_np.argmax(-1).astype(np.int64)
        else:
            colors_np = x_np.astype(np.int64)
            num_colors = int(colors_np.max()) + 1 if colors_np.size else 1

        N = int(colors_np.shape[0])
        ei_np = np.asarray(jax.device_get(edge_index)).astype(np.int64)
        row_np, col_np = ei_np[0], ei_np[1]
        E = int(row_np.shape[0])

        # Edge-multiplicity bound on host (replaces the blocking jnp.max(adj)).
        if E:
            _, counts = np.unique(col_np * max(N, 1) + row_np, return_counts=True)
            max_mult = int(counts.max())
        else:
            max_mult = 0

        # Compute dtype: int8 (exact <=127, v5e/v6e MXU int path) -> bf16
        # (exact <=256) -> f32 fallback.
        if max_mult <= 127 and _mxu_has_int8():
            cdt, acc_dt = jnp.int8, jnp.int32
        elif max_mult <= 256:
            cdt, acc_dt = jnp.bfloat16, jnp.float32
        else:
            cdt, acc_dt = jnp.float32, jnp.float32

        tm, tk, tn = _pick_tiles(N, num_colors, jnp.dtype(cdt).itemsize)
        m_pad = _round_up(max(N, 1), tm)
        k_pad = _round_up(max(N, 1), tk)
        c_pad = _round_up(max(num_colors, 1), tn)

        # ---- build padded device inputs directly in the compute dtype ----
        # Dense adjacency (target-major): adj[col[e], row[e]] += 1.
        col_dev = jnp.asarray(col_np.astype(np.int32))
        row_dev = jnp.asarray(row_np.astype(np.int32))
        adj = jnp.zeros((m_pad, k_pad), cdt).at[col_dev, row_dev].add(
            jnp.ones((E,), cdt)
        )
        colors_pad = np.full((k_pad,), -1, np.int32)
        colors_pad[:N] = colors_np
        x_oh = jax.nn.one_hot(jnp.asarray(colors_pad), c_pad, dtype=cdt)

        # ---- hot path: neighbor-color histogram on the MXU ----
        sig = wl_signature(adj, x_oh, out_dtype=acc_dt, tm=tm, tk=tk, tn=tn)

        # ---- first-appearance relabeling (host; matches the PyTorch dict) ----
        sig_np = np.asarray(jax.device_get(sig))[:N, :num_colors]
        if np.issubdtype(sig_np.dtype, np.floating):
            # f32 accumulation is exact for per-(node, color) counts < 2^24.
            assert float(sig_np.max(initial=0.0)) < 2 ** 24, "histogram overflow"
            sig_int = np.rint(sig_np).astype(np.int64)
        else:
            sig_int = sig_np.astype(np.int64)

        key_mat = np.concatenate([colors_np[:, None], sig_int], axis=1)
        uniq, inverse = np.unique(key_mat, axis=0, return_inverse=True)
        inverse = inverse.reshape(-1)
        n_uniq = uniq.shape[0]

        # Insertion order into the persistent hashmap = first appearance order.
        first_idx = np.full(n_uniq, max(N, 1), dtype=np.int64)
        np.minimum.at(first_idx, inverse, np.arange(N, dtype=np.int64))
        order = np.argsort(first_idx, kind="stable")

        # TODO(synk): the stateful first-appearance hashmap has no Pallas
        # equivalent (sequential dict); only #unique-colors entries touch it.
        group_to_id = np.empty(n_uniq, dtype=np.int64)
        for g in order:
            key = uniq[g].tobytes()
            if key not in self.hashmap:
                self.hashmap[key] = len(self.hashmap)
            group_to_id[g] = self.hashmap[key]

        out = group_to_id[inverse]
        # PyTorch returns int64; int32 carries the same values here.
        return jnp.asarray(out, dtype=jnp.int32)


def _reference_wl(colors_np, row_np, col_np, N):
    """Pure-Python reference mirroring the PyTorch loop (fresh hashmap)."""
    neigh = [[] for _ in range(N)]
    for e in range(row_np.shape[0]):
        neigh[int(col_np[e])].append(int(colors_np[int(row_np[e])]))
    hashmap, out = {}, []
    for i in range(N):
        key = (int(colors_np[i]),) + tuple(sorted(neigh[i]))
        if key not in hashmap:
            hashmap[key] = len(hashmap)
        out.append(hashmap[key])
    return np.asarray(out, dtype=np.int32)


if __name__ == "__main__":
    key = jax.random.PRNGKey(0)
    k_col, k_src, k_dst = jax.random.split(key, 3)

    N, C, E = 32, 8, 64  # nodes, colors (F_in), edges

    colors = jax.random.randint(k_col, (N,), 0, C, dtype=jnp.int32)
    x_onehot = jax.nn.one_hot(colors, C, dtype=jnp.float32)      # (N, C) one-hot input
    src = jax.random.randint(k_src, (E,), 0, N, dtype=jnp.int32)
    dst = jax.random.randint(k_dst, (E,), 0, N, dtype=jnp.int32)
    edge_index = jnp.stack([src, dst], axis=0)                   # (2, E)

    conv = WLConv()
    out = conv(x_onehot, edge_index)
    out = jax.block_until_ready(out)

    ref = _reference_wl(np.asarray(colors), np.asarray(src), np.asarray(dst), N)
    assert out.shape == (N,)
    assert np.array_equal(np.asarray(out), ref), (np.asarray(out), ref)

    print("KERNEL_OK")
</pallas_src>

<mosaic_0001>
module attributes {stable_mosaic.version = 11 : i64} {
  func.func @_wl_hist_kernel(%arg0: i32, %arg1: i32, %arg2: i32, %arg3: memref<32x128xbf16, #tpu.memory_space<vmem>>, %arg4: memref<128x128xbf16, #tpu.memory_space<vmem>>, %arg5: memref<32x128xf32, #tpu.memory_space<vmem>>) attributes {dimension_semantics = [#tpu.dimension_semantics<parallel>, #tpu.dimension_semantics<parallel>, #tpu.dimension_semantics<arbitrary>], iteration_bounds = array<i64: 1, 1, 1>, scalar_prefetch = 0 : i64, scratch_operands = 0 : i64, tpu.core_type = #tpu.core_type<tc>, window_params = [{transform_indices = @transform_0, window_bounds = array<i64: 32, 128>}, {transform_indices = @transform_1, window_bounds = array<i64: 128, 128>}, {transform_indices = @transform_2, window_bounds = array<i64: 32, 128>}]} {
    %c0_i32 = arith.constant 0 : i32
    %0 = arith.cmpi eq, %arg2, %c0_i32 : i32
    %1 = arith.extui %0 : i1 to i32
    %c0_i32_0 = arith.constant 0 : i32
    %2 = arith.cmpi ne, %1, %c0_i32_0 : i32
    scf.if %2 {
      %cst_8 = arith.constant 0.000000e+00 : f32
      %9 = vector.broadcast %cst_8 : f32 to vector<32x128xf32>
      %c0_9 = arith.constant 0 : index
      %c0_10 = arith.constant 0 : index
      %10 = vector.load %arg5[%c0_9, %c0_10] : memref<32x128xf32, #tpu.memory_space<vmem>>, vector<32x128xf32>
      tpu.vector_store %arg5[%c0_9, %c0_10], %9 {strides = array<i32>} : memref<32x128xf32, #tpu.memory_space<vmem>>, vector<32x128xf32>,
    } else {
    }
    %c0 = arith.constant 0 : index
    %c0_1 = arith.constant 0 : index
    %3 = vector.load %arg5[%c0, %c0_1] : memref<32x128xf32, #tpu.memory_space<vmem>>, vector<32x128xf32>
    %c0_2 = arith.constant 0 : index
    %c0_3 = arith.constant 0 : index
    %4 = vector.load %arg3[%c0_2, %c0_3] : memref<32x128xbf16, #tpu.memory_space<vmem>>, vector<32x128xbf16>
    %c0_4 = arith.constant 0 : index
    %c0_5 = arith.constant 0 : index
    %5 = vector.load %arg4[%c0_4, %c0_5] : memref<128x128xbf16, #tpu.memory_space<vmem>>, vector<128x128xbf16>
    %cst = arith.constant dense<0.000000e+00> : vector<32x128xf32>
    %6 = tpu.matmul %4, %5, %cst {dimension_numbers = #tpu.dot_dimension_numbers<[1], [0], [0], [1], [0, 0, 1, 1], [], []>} : vector<32x128xbf16>, vector<128x128xbf16>, vector<32x128xf32> -> vector<32x128xf32>
    %7 = arith.addf %3, %6 : vector<32x128xf32>
    %c0_6 = arith.constant 0 : index
    %c0_7 = arith.constant 0 : index
    %8 = vector.load %arg5[%c0_6, %c0_7] : memref<32x128xf32, #tpu.memory_space<vmem>>, vector<32x128xf32>
    tpu.vector_store %arg5[%c0_6, %c0_7], %7 {strides = array<i32>} : memref<32x128xf32, #tpu.memory_space<vmem>>, vector<32x128xf32>,
    return
  }
  func.func @transform_0(%arg0: i32, %arg1: i32, %arg2: i32) -> (i32, i32) {
    %c0_i32 = arith.constant 0 : i32
    return %arg0, %arg2 : i32, i32
  }
  func.func @transform_1(%arg0: i32, %arg1: i32, %arg2: i32) -> (i32, i32) {
    %c0_i32 = arith.constant 0 : i32
    return %arg2, %arg1 : i32, i32
  }
  func.func @transform_2(%arg0: i32, %arg1: i32, %arg2: i32) -> (i32, i32) {
    %c0_i32 = arith.constant 0 : i32
    return %arg0, %arg1 : i32, i32
  }
}

</mosaic_0001>

<llo_original>
// kernel: tpu_custom_call.1
$region0: #{tpu_custom_call.1}
  #allocation0 [shape = 'u32[]', space=smem, size = 0x4, offset = 0x4, fixed_abs, tag = 'smem constant byte address 0x4 - core index']
  #allocation1 [shape = 'u32[72,128]{1,0:T(1,128)}', space=vmem, size = 0x9000, scoped, tag = 'internal scratch']
  %s0 = inlined_call_operand.hbm [shape: bf16[32,128], index: 0, kind: input, shape index: {}]
  %s1 = inlined_call_operand.hbm [shape: bf16[128,128], index: 1, kind: input, shape index: {}]
  %s2 = inlined_call_operand.hbm [shape: f32[32,128], index: 2, kind: output, shape index: {}]
  %s3 = sld [smem:[#allocation0]]
  $region30: #{tpu_custom_call.1} parent=0
    _
  %s5 = ssub.s32 1, %s3
  %s6 = scalar_select 0, %s5, %s3
  $region1: #{tpu_custom_call.1} parent=0
    #allocation2 [shape = 'u8[8192]{0}', space=vmem, size = 0x2000, scoped, tag = 'input window, operand 0, single buffered']
    #allocation3 [shape = 's32[1]{0}', space=sflag, size = 0x4, scoped, tag = 'scoped memory for tpu_custom_call.1']
    #allocation4 [shape = 's32[1]{0}', space=sflag, size = 0x4, scoped, tag = 'scoped memory for tpu_custom_call.1']
    #allocation5 [shape = 'u8[32768]{0}', space=vmem, size = 0x8000, scoped, tag = 'input window, operand 1, single buffered']
    #allocation6 [shape = 's32[1]{0}', space=sflag, size = 0x4, scoped, tag = 'scoped memory for tpu_custom_call.1']
    #allocation7 [shape = 'u8[16384]{0}', space=vmem, size = 0x4000, scoped, tag = 'output window, operand 0, single buffered']
    %7 = vsyncpa [#allocation3], 0
    %8 = vsyncpa [#allocation6], 0
    %9 = vsyncpa [#allocation4], 0
    // Predicated region
    $region2: #{tpu_custom_call.1} parent=1 // pred_check
      _
    $region3: #{tpu_custom_call.1} parent=1 // pred_check_branch
      %11 = sbr.rel (0) target = $region5
    $region4: #{tpu_custom_call.1} parent=1 // pred_region
      %13 = vsyncadd [#allocation3], 0
      %s14 = sshll.u32 %s0, 4
      %s15 = int_to_ptr.hbm [resolvable:$true] %s14
      %s16 = sshll.u32 [#allocation2], 4
      %s17 = int_to_ptr.vmem [resolvable:$true] %s16
      %22 = dma.hbm_to_vmem [thread:$0]  %s15, 256, %s17, [#allocation3], 64, 64, 4
    $region5: #{tpu_custom_call.1} parent=1 // pred_fallthru
      _
    // Predicated region
    $region6: #{tpu_custom_call.1} parent=1 // pred_check
      _
    $region7: #{tpu_custom_call.1} parent=1 // pred_check_branch
      %24 = sbr.rel (0) target = $region9
    $region8: #{tpu_custom_call.1} parent=1 // pred_region
      %26 = vsyncadd [#allocation6], 0
      %s27 = sshll.u32 %s1, 4
      %s28 = int_to_ptr.hbm [resolvable:$true] %s27
      %s29 = sshll.u32 [#allocation5], 4
      %s30 = int_to_ptr.vmem [resolvable:$true] %s29
      %35 = dma.hbm_to_vmem [thread:$0]  %s28, 1024, %s30, [#allocation6], 64, 64, 4
    $region9: #{tpu_custom_call.1} parent=1 // pred_fallthru
      _
    // Predicated region
    $region10: #{tpu_custom_call.1} parent=1 // pred_check
      _
    $region11: #{tpu_custom_call.1} parent=1 // pred_check_branch
      %37 = sbr.rel (0) target = $region13
    $region12: #{tpu_custom_call.1} parent=1 // pred_region
      %39 = dma.done [#allocation3], 256
    $region13: #{tpu_custom_call.1} parent=1 // pred_fallthru
      _
    // Predicated region
    $region14: #{tpu_custom_call.1} parent=1 // pred_check
      _
    $region15: #{tpu_custom_call.1} parent=1 // pred_check_branch
      %41 = sbr.rel (0) target = $region17
    $region16: #{tpu_custom_call.1} parent=1 // pred_region
      %43 = dma.done [#allocation6], 1024
    $region17: #{tpu_custom_call.1} parent=1 // pred_fallthru
      _
    %p44 = scmp.eq.s32.totalorder 0, 0
    // Predicated region
    $region18: #{tpu_custom_call.1} parent=1 // pred_check
      %p45 = pneg %p44
    $region19: #{tpu_custom_call.1} parent=1 // pred_check_branch
      %47 = sbr.rel (%p45) target = $region21
    $region20: #{tpu_custom_call.1} parent=1 // pred_region
      %48 = vst [vmem:[#allocation7] sm:$0xff] 0.0
      %49 = vst [vmem:[#allocation7 + $0x8] sm:$0xff] 0.0
      %50 = vst [vmem:[#allocation7 + $0x10] sm:$0xff] 0.0
      %51 = vst [vmem:[#allocation7 + $0x18] sm:$0xff] 0.0
    $region21: #{tpu_custom_call.1} parent=1 // pred_fallthru
      _
    %v52 = vld [vmem:[#allocation7] sm:$0xff]
    %v53 = vld [vmem:[#allocation7 + $0x8] sm:$0xff]
    %v54 = vld [vmem:[#allocation7 + $0x10] sm:$0xff]
    %v55 = vld [vmem:[#allocation7 + $0x18] sm:$0xff]
    %v56 = vld [vmem:[#allocation2] sm:$0xf]
    %v57 = vld [vmem:[#allocation2 + $0x4] sm:$0xf]
    %v58 = vld [vmem:[#allocation2 + $0x8] sm:$0xf]
    %v59 = vld [vmem:[#allocation2 + $0xc] sm:$0xf]
    %v60 = vld [vmem:[#allocation5] sm:$0xf]
    %v61 = vld [vmem:[#allocation5 + $0x4] sm:$0xf]
    %v62 = vld [vmem:[#allocation5 + $0x8] sm:$0xf]
    %v63 = vld [vmem:[#allocation5 + $0xc] sm:$0xf]
    %v64 = vld [vmem:[#allocation5 + $0x10] sm:$0xf]
    %v65 = vld [vmem:[#allocation5 + $0x14] sm:$0xf]
    %v66 = vld [vmem:[#allocation5 + $0x18] sm:$0xf]
    %v67 = vld [vmem:[#allocation5 + $0x1c] sm:$0xf]
    %v68 = vld [vmem:[#allocation5 + $0x20] sm:$0xf]
    %v69 = vld [vmem:[#allocation5 + $0x24] sm:$0xf]
    %v70 = vld [vmem:[#allocation5 + $0x28] sm:$0xf]
    %v71 = vld [vmem:[#allocation5 + $0x2c] sm:$0xf]
    %v72 = vld [vmem:[#allocation5 + $0x30] sm:$0xf]
    %v73 = vld [vmem:[#allocation5 + $0x34] sm:$0xf]
    %v74 = vld [vmem:[#allocation5 + $0x38] sm:$0xf]
    %v75 = vld [vmem:[#allocation5 + $0x3c] sm:$0xf]
    %v80 = vunpack.c.l.b16 %v56
    %v81 = vunpack.c.l.b16 %v57
    %v82 = vunpack.c.l.b16 %v58
    %v83 = vunpack.c.l.b16 %v59
    %v84 = vpack.c.b16 %v81, %v80
    %v85 = vpack.c.b16 %v83, %v82
    %v104 = vunpack.c.l.b16 %v60
    %v105 = vunpack.c.l.b16 %v61
    %v106 = vunpack.c.l.b16 %v62
    %v107 = vunpack.c.l.b16 %v63
    %v108 = vunpack.c.l.b16 %v64
    %v109 = vunpack.c.l.b16 %v65
    %v110 = vunpack.c.l.b16 %v66
    %v111 = vunpack.c.l.b16 %v67
    %v112 = vunpack.c.l.b16 %v68
    %v113 = vunpack.c.l.b16 %v69
    %v114 = vunpack.c.l.b16 %v70
    %v115 = vunpack.c.l.b16 %v71
    %v116 = vunpack.c.l.b16 %v72
    %v117 = vunpack.c.l.b16 %v73
    %v118 = vunpack.c.l.b16 %v74
    %v119 = vunpack.c.l.b16 %v75
    %v120 = vpack.c.b16 %v105, %v104
    %v121 = vpack.c.b16 %v107, %v106
    %v122 = vpack.c.b16 %v109, %v108
    %v123 = vpack.c.b16 %v111, %v110
    %v124 = vpack.c.b16 %v113, %v112
    %v125 = vpack.c.b16 %v115, %v114
    %v126 = vpack.c.b16 %v117, %v116
    %v127 = vpack.c.b16 %v119, %v118
    %136 = vmatpush.bf16.msra.mxu0 %v127
    %137 = vmatpush.bf16.msra.mxu0 %v126
    %138 = vmatpush.bf16.msra.mxu0 %v125
    %139 = vmatpush.bf16.msra.mxu0 %v124
    %140 = vmatpush.bf16.msra.mxu0 %v123
    %141 = vmatpush.bf16.msra.mxu0 %v122
    %142 = vmatpush.bf16.msra.mxu0 %v121
    %143 = vmatpush.bf16.msra.mxu0 %v120
    %144 = vmatmul.bf16.gmra.mxu0 %v84
    %v145 = vpop.f32.mrf.mxu0
    %v146 = vadd.f32 0.0, %v145
    %v147 = vpop.f32.mrf.mxu0
    %v148 = vadd.f32 0.0, %v147
    %149 = vmatmul.bf16.gmra.mxu0 %v85
    %v150 = vpop.f32.mrf.mxu0
    %v151 = vadd.f32 0.0, %v150
    %v152 = vpop.f32.mrf.mxu0
    %v153 = vadd.f32 0.0, %v152
    %154 = vdwg.mxu0
    %v155 = vadd.f32 %v52, %v146
    %v156 = vadd.f32 %v53, %v148
    %v157 = vadd.f32 %v54, %v151
    %v158 = vadd.f32 %v55, %v153
    %159 = vst [vmem:[#allocation7] sm:$0xff] %v155
    %160 = vst [vmem:[#allocation7 + $0x8] sm:$0xff] %v156
    %161 = vst [vmem:[#allocation7 + $0x10] sm:$0xff] %v157
    %162 = vst [vmem:[#allocation7 + $0x18] sm:$0xff] %v158
    // Predicated region
    $region22: #{tpu_custom_call.1} parent=1 // pred_check
      _
    $region23: #{tpu_custom_call.1} parent=1 // pred_check_branch
      %164 = sbr.rel (0) target = $region25
    $region24: #{tpu_custom_call.1} parent=1 // pred_region
      %166 = vsyncadd [#allocation4], 0
      %s167 = sshll.u32 [#allocation7], 4
      %s168 = int_to_ptr.vmem [resolvable:$true] %s167
      %s169 = sshll.u32 %s2, 4
      %s170 = int_to_ptr.hbm [resolvable:$true] %s169
      %175 = dma.vmem_to_hbm [thread:$0]  %s168, 512, %s170, [#allocation4], 128, 128, 8
    $region25: #{tpu_custom_call.1} parent=1 // pred_fallthru
      _
    // Predicated region
    $region26: #{tpu_custom_call.1} parent=1 // pred_check
      _
    $region27: #{tpu_custom_call.1} parent=1 // pred_check_branch
      %177 = sbr.rel (0) target = $region29
    $region28: #{tpu_custom_call.1} parent=1 // pred_region
      %179 = dma.done [#allocation4], 512
    $region29: #{tpu_custom_call.1} parent=1 // pred_fallthru
      _
    %180 = vsyncpa [#allocation3], 1
    %181 = vsyncpa [#allocation6], 1
    %182 = vsyncpa [#allocation4], 1

</llo_original>
